<compile_context>
chip_gen: v6e
topology: v6e:2x2x1
jax: 0.10.0
libtpu: 0.0.40
codegen_flags: <defaults>
</compile_context>

<pallas_src>
import functools

import jax
import jax.numpy as jnp
from jax.experimental import pallas as pl
from jax.experimental.pallas import tpu as pltpu


# ----------------------------- Pallas kernel ----------------------------------

def bias_encoder_kernel(spd_ref, ee_ref, w_ref, gt_ref, out_ref, *, H):
    # Single MXU contraction over K = D*H: fuses the per-distance bmm and the
    # sum over distances. (H, DH) @ (DH, TL) -> (H, TL), f32 accumulation.
    acc = jnp.dot(w_ref[...], ee_ref[...], preferred_element_type=jnp.float32)

    spd = spd_ref[...].astype(jnp.float32)          # (H+2, TL)
    sp = spd[:H]                                    # (H, TL)
    dist = spd[H:H + 1]                             # (1, TL)
    mask = spd[H + 1:H + 2]                         # (1, TL) 0/1

    # clamp(min=1) + divide -> multiply by EUP approximate reciprocal.
    inv = pl.reciprocal(jnp.maximum(dist, 1.0), approx=True)
    inner = sp + acc * inv                          # (H, TL)

    # Graph-token overwrite on row-0 / col-0 slots of the padded adjacency.
    # (H,1) graph token and (1,TL) mask broadcast inside the where.
    out_ref[...] = jnp.where(mask > 0.0, gt_ref[...], inner)


def bias_encoder_pallas(spd, ee, w, gt, *, lane_tile):
    Hp2, Ltot = spd.shape
    DH = ee.shape[0]
    H = gt.shape[0]
    TL = lane_tile
    assert Ltot % TL == 0 and TL % 128 == 0

    kernel = functools.partial(bias_encoder_kernel, H=H)
    return pl.pallas_call(
        kernel,
        out_shape=jax.ShapeDtypeStruct((H, Ltot), jnp.float32),
        grid=(Ltot // TL,),
        in_specs=[
            pl.BlockSpec((Hp2, TL), lambda t: (0, t)),   # sp + dist + mask rows
            pl.BlockSpec((DH, TL), lambda t: (0, t)),    # edge encodings
            pl.BlockSpec((H, DH), lambda t: (0, 0)),     # edge_dis weight (shared)
            pl.BlockSpec((H, 1), lambda t: (0, 0)),      # graph token (shared)
        ],
        out_specs=pl.BlockSpec((H, TL), lambda t: (0, t)),
        compiler_params=pltpu.CompilerParams(
            dimension_semantics=("parallel",),
        ),
    )(spd, ee, w, gt)


# ------------------------ plain-JAX glue (scatter etc.) ------------------------
# TODO(synk): PyG `to_dense_adj` is a data-dependent scatter; kept in JAX glue.

def to_dense_adj(graph_index, batch, edge_attr, B, N):
    """JAX equivalent of torch_geometric.utils.to_dense_adj (channels-last)."""
    src, dst = graph_index[0], graph_index[1]
    b = batch[src]
    i = src - b * N
    j = dst - b * N
    attr = jnp.asarray(edge_attr)
    out = jnp.zeros((B, N, N) + attr.shape[1:], attr.dtype)
    return out.at[b, i, j].add(attr)


def dense_lanes_channel_first(graph_index, batch, edge_attr, B, N, NP, L_pad):
    """Scatter edge attrs to a channels-first, lane-dense slab (C, B*L_pad).

    Lane index = b*L_pad + (i+1)*NP + (j+1): the graph-token row/col 0 of the
    (NP, NP) padded adjacency is inserted directly, so no later pad/transpose
    and no big HBM transpose before the kernel.
    """
    src, dst = graph_index[0], graph_index[1]
    b = batch[src]
    i = src - b * N
    j = dst - b * N
    lane = b * L_pad + (i + 1) * NP + (j + 1)
    attr = jnp.asarray(edge_attr)
    if attr.ndim == 1:
        attr = attr[:, None]
    C = attr.shape[1]
    out = jnp.zeros((C, B * L_pad), attr.dtype)
    return out.at[:, lane].add(attr.T)


def _round_up(x, m):
    return ((x + m - 1) // m) * m


def _choose_lane_tile(l_total, max_tile=8192, min_steps=2):
    """Largest 128-multiple that divides l_total and is <= max_tile.

    Prefers a tile giving >= min_steps grid steps (v7x megacore balance).
    No rounding of l_total itself -> no wasted zero-lane streaming.
    """
    cands = [t for t in range(128, min(l_total, max_tile) + 1, 128)
             if l_total % t == 0]
    if not cands:
        return l_total
    good = [t for t in cands if l_total // t >= min_steps]
    return max(good) if good else max(cands)


def reference_attn_bias(spatial_emb, edge_emb, edge_dis_w, graph_token,
                        graph_index, batch, spatial_types, shortest_path_types,
                        B, N, H, max_dist):
    """Pure-JAX transcription of the PyTorch forward (correctness check)."""
    sp_enc = to_dense_adj(graph_index, batch, spatial_emb[spatial_types], B, N)
    bias = jnp.transpose(sp_enc, (0, 3, 1, 2))                       # (B,H,N,N)
    edge_enc = to_dense_adj(graph_index, batch, edge_emb[shortest_path_types], B, N)
    spd = to_dense_adj(graph_index, batch, spatial_types.astype(jnp.float32), B, N)
    spd = jnp.clip(spd, 1.0)[:, None]                                # (B,1,N,N)
    ee = jnp.transpose(edge_enc, (3, 0, 1, 2, 4)).reshape(max_dist, -1, H)
    W = edge_dis_w.reshape(-1, H, H)
    ee = jnp.einsum('dmh,dhk->dmk', ee, W)                           # bmm
    ee = jnp.transpose(ee.reshape(max_dist, B, N, N, H), (1, 2, 3, 0, 4))
    ee = jnp.transpose(ee.sum(-2), (0, 3, 1, 2)) / spd
    bias = bias + ee
    bias = jnp.pad(bias, ((0, 0), (0, 0), (1, 0), (1, 0)))           # INSERT_GRAPH_TOKEN
    gt = graph_token.reshape(1, H, 1)
    bias = bias.at[:, :, 1:, 0].set(jnp.broadcast_to(gt, (B, H, N)))
    bias = bias.at[:, :, 0, :].set(jnp.broadcast_to(gt, (B, H, N + 1)))
    return bias.reshape(B * H, N + 1, N + 1)


# ------------------------------------ demo -------------------------------------

if __name__ == "__main__":
    # Small, deterministic configuration.
    B, N, H = 2, 8, 4
    num_spatial_types = 6
    max_dist = num_spatial_types   # required by the original reshape/bmm
    num_edge_types = 5
    NP = N + 1
    NPNP = NP * NP
    DH = max_dist * H

    key = jax.random.PRNGKey(0)
    k_sp, k_ee, k_ed, k_gt, k_st, k_spt = jax.random.split(key, 6)

    # Parameters (normal_(std=0.02) as in reset_parameters).
    spatial_emb = 0.02 * jax.random.normal(k_sp, (num_spatial_types + 1, H), jnp.float32)
    edge_emb = 0.02 * jax.random.normal(k_ee, (num_edge_types, H), jnp.float32)
    edge_dis_w = 0.02 * jax.random.normal(k_ed, (num_spatial_types * H * H, 1), jnp.float32)
    graph_token = 0.02 * jax.random.normal(k_gt, (1, H, 1), jnp.float32)

    # Synthetic batched graph: B graphs of N nodes, ring + skip-3 edges.
    srcs, dsts = [], []
    for b in range(B):
        for i in range(N):
            for k in (1, 3):
                srcs.append(b * N + i)
                dsts.append(b * N + (i + k) % N)
    graph_index = jnp.array([srcs, dsts], dtype=jnp.int32)
    E = graph_index.shape[1]
    batch = jnp.repeat(jnp.arange(B, dtype=jnp.int32), N)
    spatial_types = jax.random.randint(k_st, (E,), 0, num_spatial_types + 1, jnp.int32)
    shortest_path_types = jax.random.randint(k_spt, (E, max_dist), 0, num_edge_types, jnp.int32)

    # ----------- build kernel inputs (batch folded into lanes, channels-first) -----------
    L_pad = _round_up(NPNP, 128)          # per-graph lane span (graph token included)
    Ltot = B * L_pad                      # total lane axis
    TL = _choose_lane_tile(Ltot)

    sp_attr = spatial_emb[spatial_types]                                   # (E, H)
    ee_attr = edge_emb[shortest_path_types].reshape(E, DH)                 # (E, D*H)
    dist_attr = spatial_types.astype(jnp.float32)                          # (E,)

    sp_lanes = dense_lanes_channel_first(graph_index, batch, sp_attr, B, N, NP, L_pad)    # (H, Ltot)
    ee_lanes = dense_lanes_channel_first(graph_index, batch, ee_attr, B, N, NP, L_pad)    # (DH, Ltot)
    dist_lanes = dense_lanes_channel_first(graph_index, batch, dist_attr, B, N, NP, L_pad)  # (1, Ltot)

    # Graph-token mask: 1.0 where row==0 or col==0 of the padded adjacency.
    lane = jnp.arange(L_pad)
    row, col = lane // NP, lane % NP
    mask1 = (((row == 0) | (col == 0)) & (lane < NPNP)).astype(jnp.float32)
    mask_lanes = jnp.tile(mask1, (B,))[None, :]                            # (1, Ltot)

    # Pack the 1-row streams as extra bf16 rows of the spatial operand.
    spd_k = jnp.concatenate([sp_lanes, dist_lanes, mask_lanes], axis=0).astype(jnp.bfloat16)  # (H+2, Ltot)
    ee_k = ee_lanes.astype(jnp.bfloat16)                                   # (DH, Ltot)

    # W^T with fused (distance, head_in) contraction axis: (H, D*H).
    w_k = edge_dis_w.reshape(DH, H).T.astype(jnp.bfloat16)
    gt_k = graph_token.reshape(H, 1).astype(jnp.float32)

    # ------------------------------- run kernel -------------------------------
    out = bias_encoder_pallas(spd_k, ee_k, w_k, gt_k, lane_tile=TL)
    out = jax.block_until_ready(out)

    # Lane-dense (H, B*L_pad) -> PyTorch attn_bias (B*H, NP, NP): slice padding,
    # bring batch in front of heads, reshape. No transpose of the pair axis.
    attn_bias = out.reshape(H, B, L_pad)[:, :, :NPNP]
    attn_bias = jnp.transpose(attn_bias, (1, 0, 2)).reshape(B * H, NP, NP)

    # ------------------------------ correctness -------------------------------
    ref = reference_attn_bias(spatial_emb, edge_emb, edge_dis_w, graph_token,
                              graph_index, batch, spatial_types, shortest_path_types,
                              B, N, H, max_dist)
    assert attn_bias.shape == ref.shape == (B * H, NP, NP)
    # bf16 streamed inputs + approximate reciprocal => loosened tolerance vs f32 ref.
    assert jnp.allclose(attn_bias, ref, atol=2e-3, rtol=1e-2), "mismatch vs reference"
    print("KERNEL_OK")
</pallas_src>

<mosaic_0001>
module attributes {stable_mosaic.version = 11 : i64} {
  func.func @bias_encoder_kernel(%arg0: i32, %arg1: memref<6x128xbf16, #tpu.memory_space<vmem>>, %arg2: memref<24x128xbf16, #tpu.memory_space<vmem>>, %arg3: memref<4x24xbf16, #tpu.memory_space<vmem>>, %arg4: memref<4x1xf32, #tpu.memory_space<vmem>>, %arg5: memref<4x128xf32, #tpu.memory_space<vmem>>) attributes {dimension_semantics = [#tpu.dimension_semantics<parallel>], iteration_bounds = array<i64: 2>, scalar_prefetch = 0 : i64, scratch_operands = 0 : i64, tpu.core_type = #tpu.core_type<tc>, window_params = [{transform_indices = @transform_0, window_bounds = array<i64: 6, 128>}, {transform_indices = @transform_1, window_bounds = array<i64: 24, 128>}, {pipeline_mode = #tpu.pipeline_mode<synchronous>, transform_indices = @transform_2, window_bounds = array<i64: 4, 24>}, {pipeline_mode = #tpu.pipeline_mode<synchronous>, transform_indices = @transform_3, window_bounds = array<i64: 4, 1>}, {transform_indices = @transform_4, window_bounds = array<i64: 4, 128>}]} {
    %c0 = arith.constant 0 : index
    %c0_0 = arith.constant 0 : index
    %0 = vector.load %arg3[%c0, %c0_0] : memref<4x24xbf16, #tpu.memory_space<vmem>>, vector<4x24xbf16>
    %c0_1 = arith.constant 0 : index
    %c0_2 = arith.constant 0 : index
    %1 = vector.load %arg2[%c0_1, %c0_2] : memref<24x128xbf16, #tpu.memory_space<vmem>>, vector<24x128xbf16>
    %cst = arith.constant dense<0.000000e+00> : vector<4x128xf32>
    %2 = tpu.matmul %0, %1, %cst {dimension_numbers = #tpu.dot_dimension_numbers<[1], [0], [0], [1], [0, 0, 1, 1], [], []>} : vector<4x24xbf16>, vector<24x128xbf16>, vector<4x128xf32> -> vector<4x128xf32>
    %c0_3 = arith.constant 0 : index
    %c0_4 = arith.constant 0 : index
    %3 = vector.load %arg1[%c0_3, %c0_4] : memref<6x128xbf16, #tpu.memory_space<vmem>>, vector<6x128xbf16>
    %4 = arith.extf %3 : vector<6x128xbf16> to vector<6x128xf32>
    %5 = vector.extract_strided_slice %4 {offsets = [0, 0], sizes = [4, 128], strides = [1, 1]} : vector<6x128xf32> to vector<4x128xf32>
    %6 = vector.extract_strided_slice %4 {offsets = [4, 0], sizes = [1, 128], strides = [1, 1]} : vector<6x128xf32> to vector<1x128xf32>
    %7 = vector.extract_strided_slice %4 {offsets = [5, 0], sizes = [1, 128], strides = [1, 1]} : vector<6x128xf32> to vector<1x128xf32>
    %cst_5 = arith.constant 1.000000e+00 : f32
    %8 = vector.broadcast %cst_5 : f32 to vector<1x128xf32>
    %9 = arith.maximumf %6, %8 : vector<1x128xf32>
    %10 = tpu.reciprocal %9 {approx = true} : vector<1x128xf32> -> vector<1x128xf32>
    %11 = vector.broadcast %10 : vector<1x128xf32> to vector<4x128xf32>
    %12 = arith.mulf %2, %11 : vector<4x128xf32>
    %13 = arith.addf %5, %12 : vector<4x128xf32>
    %cst_6 = arith.constant 0.000000e+00 : f32
    %14 = vector.broadcast %cst_6 : f32 to vector<1x128xf32>
    %15 = arith.cmpf ogt, %7, %14 : vector<1x128xf32>
    %c0_7 = arith.constant 0 : index
    %c0_8 = arith.constant 0 : index
    %16 = vector.load %arg4[%c0_7, %c0_8] : memref<4x1xf32, #tpu.memory_space<vmem>>, vector<4x1xf32>
    %17 = vector.shape_cast %15 : vector<1x128xi1> to vector<1x128xi1>
    %18 = vector.broadcast %17 : vector<1x128xi1> to vector<4x128xi1>
    %19 = vector.shape_cast %16 : vector<4x1xf32> to vector<4x1xf32>
    %20 = vector.broadcast %19 : vector<4x1xf32> to vector<4x128xf32>
    %21 = arith.select %18, %20, %13 : vector<4x128xi1>, vector<4x128xf32>
    %c0_9 = arith.constant 0 : index
    %c0_10 = arith.constant 0 : index
    %22 = vector.load %arg5[%c0_9, %c0_10] : memref<4x128xf32, #tpu.memory_space<vmem>>, vector<4x128xf32>
    tpu.vector_store %arg5[%c0_9, %c0_10], %21 {strides = array<i32>} : memref<4x128xf32, #tpu.memory_space<vmem>>, vector<4x128xf32>,
    return
  }
  func.func @transform_0(%arg0: i32) -> (i32, i32) {
    %c0_i32 = arith.constant 0 : i32
    %c0_i32_0 = arith.constant 0 : i32
    return %c0_i32, %arg0 : i32, i32
  }
  func.func @transform_1(%arg0: i32) -> (i32, i32) {
    %c0_i32 = arith.constant 0 : i32
    %c0_i32_0 = arith.constant 0 : i32
    return %c0_i32, %arg0 : i32, i32
  }
  func.func @transform_2(%arg0: i32) -> (i32, i32) {
    %c0_i32 = arith.constant 0 : i32
    %c0_i32_0 = arith.constant 0 : i32
    %c0_i32_1 = arith.constant 0 : i32
    return %c0_i32, %c0_i32_0 : i32, i32
  }
  func.func @transform_3(%arg0: i32) -> (i32, i32) {
    %c0_i32 = arith.constant 0 : i32
    %c0_i32_0 = arith.constant 0 : i32
    %c0_i32_1 = arith.constant 0 : i32
    return %c0_i32, %c0_i32_0 : i32, i32
  }
  func.func @transform_4(%arg0: i32) -> (i32, i32) {
    %c0_i32 = arith.constant 0 : i32
    %c0_i32_0 = arith.constant 0 : i32
    return %c0_i32, %arg0 : i32, i32
  }
}

</mosaic_0001>

<llo_original>
// kernel: tpu_custom_call.1
$region0: #{tpu_custom_call.1}
  #allocation0 [shape = 'u32[]', space=smem, size = 0x4, offset = 0x4, fixed_abs, tag = 'smem constant byte address 0x4 - core index']
  #allocation1 [shape = 'u32[144,128]{1,0:T(1,128)}', space=vmem, size = 0x12000, scoped, tag = 'internal scratch']
  %s0 = inlined_call_operand.hbm [shape: bf16[6,256], index: 0, kind: input, shape index: {}]
  %s1 = inlined_call_operand.hbm [shape: bf16[24,256], index: 1, kind: input, shape index: {}]
  %s2 = inlined_call_operand.vmem [shape: bf16[4,24], index: 2, kind: input, shape index: {}]
  %s3 = inlined_call_operand.vmem [shape: f32[4,1], index: 3, kind: input, shape index: {}]
  %s4 = inlined_call_operand.hbm [shape: f32[4,256], index: 4, kind: output, shape index: {}]
  %s5 = sld [smem:[#allocation0]]
  $region57: #{tpu_custom_call.1} parent=0
    _
  %s7 = ssub.s32 1, %s5
  %s8 = scalar_select 0, %s7, %s5
  $region1: #{tpu_custom_call.1} parent=0
    #allocation2 [shape = 'u8[4096]{0}', space=vmem, size = 0x1000, scoped, tag = 'input window, operand 0']
    #allocation3 [shape = 's32[2]{0}', space=sflag, size = 0x8, scoped, tag = 'scoped memory for tpu_custom_call.1']
    #allocation4 [shape = 's32[2]{0}', space=sflag, size = 0x8, scoped, tag = 'scoped memory for tpu_custom_call.1']
    #allocation5 [shape = 'u8[12288]{0}', space=vmem, size = 0x3000, scoped, tag = 'input window, operand 1']
    #allocation6 [shape = 's32[2]{0}', space=sflag, size = 0x8, scoped, tag = 'scoped memory for tpu_custom_call.1']
    #allocation7 [shape = 'u8[4096]{0}', space=vmem, size = 0x1000, scoped, tag = 'output window, operand 0']
    %9 = vsyncpa [#allocation3], 0
    %s10 = scalar_lea.sflag [#allocation3], 1
    %11 = vsyncpa %s10, 0
    %12 = vsyncpa [#allocation6], 0
    %s13 = scalar_lea.sflag [#allocation6], 1
    %14 = vsyncpa %s13, 0
    %15 = vsyncpa [#allocation4], 0
    %s16 = scalar_lea.sflag [#allocation4], 1
    %17 = vsyncpa %s16, 0
    loop: start=0, step=1, limit=4
    $region2: #{tpu_custom_call.1} parent=1 // loop_pre_header
      _
    $region3: #{tpu_custom_call.1} parent=1 // loop_header
      %s19 = sphi 0, %s23
      %p20 = scmp.ge.s32.totalorder %s19, 4
      %s29 = sphi 0, %s31
      %s32 = sphi 0, %s29
      %s33 = sphi 0, %s32
      %s49 = sphi 0, %s33
      %s55 = sphi 0, %s57
      %s58 = sphi 0, %s55
      %s59 = sphi 0, %s58
      %s75 = sphi 0, %s59
      %s79 = sphi 0, %s79
      %s81 = sphi 0, %s79
      %s82 = sphi 0, %s81
      %s96 = sphi 0, %s82
      %s100 = sphi 0, %s100
      %s102 = sphi 0, %s100
      %s103 = sphi 0, %s102
      %s117 = sphi 0, %s103
      %s123 = sphi 0, %s125
      %s126 = sphi 0, %s123
      %s127 = sphi 0, %s126
      %s143 = sphi 0, %s127
    $region4: #{tpu_custom_call.1} parent=1 // loop_header_branch
      %22 = sbr.rel (%p20) target = $region8
    $region5: #{tpu_custom_call.1} parent=1 // loop_body
      %s24 = ssub.s32 %s19, 1
      %s25 = ssub.s32 %s19, 2
      %s26 = sadd.s32 %s19, 1
      %s27 = ssub.s32 %s19, %s26
      %p28 = scmp.eq.s32.totalorder %s27, 0
      %s30 = sadd.s32 %s29, 1
      %s31 = scalar_select %p28, %s29, %s30
      %p34 = pneg %p28
      %p35 = scmp.eq.s32.totalorder %s19, 1
      %p36 = por %p34, %p35
      %p37 = scmp.ne.s32.totalorder %s29, %s32
      %p38 = scmp.eq.s32.totalorder %s19, 0
      %p39 = por %p37, %p38
      %p40 = scmp.ne.s32.totalorder %s29, %s32
      %p41 = scmp.eq.s32.totalorder %s24, 1
      %p42 = por %p40, %p41
      %p43 = scmp.ne.s32.totalorder %s32, %s33
      %p44 = scmp.eq.s32.totalorder %s24, 0
      %p45 = por %p43, %p44
      %p46 = scmp.ne.s32.totalorder %s32, %s33
      %p47 = scmp.eq.s32.totalorder %s25, 1
      %p48 = por %p46, %p47
      %p50 = scmp.ne.s32.totalorder %s33, %s49
      %p51 = scmp.eq.s32.totalorder %s25, 0
      %p52 = por %p50, %p51
      %s53 = ssub.s32 %s19, %s26
      %p54 = scmp.eq.s32.totalorder %s53, 0
      %s56 = sadd.s32 %s55, 1
      %s57 = scalar_select %p54, %s55, %s56
      %p60 = pneg %p54
      %p61 = scmp.eq.s32.totalorder %s19, 1
      %p62 = por %p60, %p61
      %p63 = scmp.ne.s32.totalorder %s55, %s58
      %p64 = scmp.eq.s32.totalorder %s19, 0
      %p65 = por %p63, %p64
      %p66 = scmp.ne.s32.totalorder %s55, %s58
      %p67 = scmp.eq.s32.totalorder %s24, 1
      %p68 = por %p66, %p67
      %p69 = scmp.ne.s32.totalorder %s58, %s59
      %p70 = scmp.eq.s32.totalorder %s24, 0
      %p71 = por %p69, %p70
      %p72 = scmp.ne.s32.totalorder %s58, %s59
      %p73 = scmp.eq.s32.totalorder %s25, 1
      %p74 = por %p72, %p73
      %p76 = scmp.ne.s32.totalorder %s59, %s75
      %p77 = scmp.eq.s32.totalorder %s25, 0
      %p78 = por %p76, %p77
      %s80 = sadd.s32 %s79, 1
      %p83 = scmp.eq.s32.totalorder %s19, 1
      %p84 = scmp.ne.s32.totalorder %s79, %s81
      %p85 = scmp.eq.s32.totalorder %s19, 0
      %p86 = por %p84, %p85
      %p87 = scmp.ne.s32.totalorder %s79, %s81
      %p88 = scmp.eq.s32.totalorder %s24, 1
      %p89 = por %p87, %p88
      %p90 = scmp.ne.s32.totalorder %s81, %s82
      %p91 = scmp.eq.s32.totalorder %s24, 0
      %p92 = por %p90, %p91
      %p93 = scmp.ne.s32.totalorder %s81, %s82
      %p94 = scmp.eq.s32.totalorder %s25, 1
      %p95 = por %p93, %p94
      %p97 = scmp.ne.s32.totalorder %s82, %s96
      %p98 = scmp.eq.s32.totalorder %s25, 0
      %p99 = por %p97, %p98
      %s101 = sadd.s32 %s100, 1
      %p104 = scmp.eq.s32.totalorder %s19, 1
      %p105 = scmp.ne.s32.totalorder %s100, %s102
      %p106 = scmp.eq.s32.totalorder %s19, 0
      %p107 = por %p105, %p106
      %p108 = scmp.ne.s32.totalorder %s100, %s102
      %p109 = scmp.eq.s32.totalorder %s24, 1
      %p110 = por %p108, %p109
      %p111 = scmp.ne.s32.totalorder %s102, %s103
      %p112 = scmp.eq.s32.totalorder %s24, 0
      %p113 = por %p111, %p112
      %p114 = scmp.ne.s32.totalorder %s102, %s103
      %p115 = scmp.eq.s32.totalorder %s25, 1
      %p116 = por %p114, %p115
      %p118 = scmp.ne.s32.totalorder %s103, %s117
      %p119 = scmp.eq.s32.totalorder %s25, 0
      %p120 = por %p118, %p119
      %s121 = ssub.s32 %s19, %s26
      %p122 = scmp.eq.s32.totalorder %s121, 0
      %s124 = sadd.s32 %s123, 1
      %s125 = scalar_select %p122, %s123, %s124
      %p128 = pneg %p122
      %p129 = scmp.eq.s32.totalorder %s19, 1
      %p130 = por %p128, %p129
      %p131 = scmp.ne.s32.totalorder %s123, %s126
      %p132 = scmp.eq.s32.totalorder %s19, 0
      %p133 = por %p131, %p132
      %p134 = scmp.ne.s32.totalorder %s123, %s126
      %p135 = scmp.eq.s32.totalorder %s24, 1
      %p136 = por %p134, %p135
      %p137 = scmp.ne.s32.totalorder %s126, %s127
      %p138 = scmp.eq.s32.totalorder %s24, 0
      %p139 = por %p137, %p138
      %p140 = scmp.ne.s32.totalorder %s126, %s127
      %p141 = scmp.eq.s32.totalorder %s25, 1
      %p142 = por %p140, %p141
      %p144 = scmp.ne.s32.totalorder %s127, %s143
      %p145 = scmp.eq.s32.totalorder %s25, 0
      %p146 = por %p144, %p145
      %p147 = scmp.le.s32.totalorder 1, %s19
      %p148 = scmp.lt.s32.totalorder %s19, 3
      %p149 = pnand %p147, %p148
      %p150 = pneg %p149
      // Predicated region
      $region9: #{tpu_custom_call.1} parent=5 // pred_check
        _
      $region10: #{tpu_custom_call.1} parent=5 // pred_check_branch
        %152 = sbr.rel (%p149) target = $region12
      $region11: #{tpu_custom_call.1} parent=5 // pred_region
        %s153 = ssub.s32 %s19, 1
        // Predicated region
        $region13: #{tpu_custom_call.1} parent=11 // pred_check
          %p154 = pneg %p92
        $region14: #{tpu_custom_call.1} parent=11 // pred_check_branch
          %156 = sbr.rel (%p154) target = $region16
        $region15: #{tpu_custom_call.1} parent=11 // pred_region
          _
        $region16: #{tpu_custom_call.1} parent=11 // pred_fallthru
          _
        // Predicated region
        $region17: #{tpu_custom_call.1} parent=11 // pred_check
          %p157 = pneg %p113
        $region18: #{tpu_custom_call.1} parent=11 // pred_check_branch
          %159 = sbr.rel (%p157) target = $region20
        $region19: #{tpu_custom_call.1} parent=11 // pred_region
          _
        $region20: #{tpu_custom_call.1} parent=11 // pred_fallthru
          _
      $region12: #{tpu_custom_call.1} parent=5 // pred_fallthru
        _
      %p160 = scmp.lt.s32.totalorder %s19, 2
      // Predicated region
      $region21: #{tpu_custom_call.1} parent=5 // pred_check
        %p161 = pneg %p160
      $region22: #{tpu_custom_call.1} parent=5 // pred_check_branch
        %163 = sbr.rel (%p161) target = $region24
      $region23: #{tpu_custom_call.1} parent=5 // pred_region
        // Predicated region
        $region25: #{tpu_custom_call.1} parent=23 // pred_check
          %p164 = pneg %p39
        $region26: #{tpu_custom_call.1} parent=23 // pred_check_branch
          %166 = sbr.rel (%p164) target = $region28
        $region27: #{tpu_custom_call.1} parent=23 // pred_region
          %s167 = sand.u32 %s29, 1
          %s168 = scalar_lea.sflag [#allocation3], %s167
          %s169 = sand.u32 %s29, 1
          %s170 = smul.addr %s169, 4
          %s171 = scalar_lea.vmem [#allocation2], %s170
          %s173 = ssub.s32 64, 64
          %174 = vsyncadd %s168, %s173
          %s175 = smul.addr %s19, 64
          %s176 = scalar_lea.hbm %s0, %s175
          %s178 = sshll.u32 %s171, 4
          %s179 = int_to_ptr.vmem [resolvable:$true] %s178
          %181 = dma.hbm_to_vmem [thread:$0]  %s176, 64, %s179, %s168
        $region28: #{tpu_custom_call.1} parent=23 // pred_fallthru
          _
        // Predicated region
        $region29: #{tpu_custom_call.1} parent=23 // pred_check
          %p182 = pneg %p65
        $region30: #{tpu_custom_call.1} parent=23 // pred_check_branch
          %184 = sbr.rel (%p182) target = $region32
        $region31: #{tpu_custom_call.1} parent=23 // pred_region
          %s185 = sand.u32 %s55, 1
          %s186 = scalar_lea.sflag [#allocation6], %s185
          %s187 = sand.u32 %s55, 1
          %s188 = smul.addr %s187, 12
          %s189 = scalar_lea.vmem [#allocation5], %s188
          %s191 = ssub.s32 192, 192
          %192 = vsyncadd %s186, %s191
          %s193 = smul.addr %s19, 64
          %s194 = scalar_lea.hbm %s1, %s193
          %s195 = sshll.u32 %s189, 4
          %s196 = int_to_ptr.vmem [resolvable:$true] %s195
          %201 = dma.hbm_to_vmem [thread:$0]  %s194, 192, %s196, %s186, 128, 64, 4
        $region32: #{tpu_custom_call.1} parent=23 // pred_fallthru
          _
      $region24: #{tpu_custom_call.1} parent=5 // pred_fallthru
        _
      %p202 = scmp.le.s32.totalorder 1, %s19
      %p203 = scmp.lt.s32.totalorder %s19, 3
      %p204 = pnand %p202, %p203
      %p205 = pneg %p204
      // Predicated region
      $region33: #{tpu_custom_call.1} parent=5 // pred_check
        _
      $region34: #{tpu_custom_call.1} parent=5 // pred_check_branch
        %207 = sbr.rel (%p204) target = $region36
      $region35: #{tpu_custom_call.1} parent=5 // pred_region
        %s208 = ssub.s32 %s19, 1
        %s209 = sand.u32 %s32, 1
        %s210 = scalar_lea.sflag [#allocation3], %s209
        %s211 = sand.u32 %s32, 1
        %s212 = smul.addr %s211, 4
        %s213 = scalar_lea.vmem [#allocation2], %s212
        // Predicated region
        $region37: #{tpu_custom_call.1} parent=35 // pred_check
          %p214 = pneg %p45
        $region38: #{tpu_custom_call.1} parent=35 // pred_check_branch
          %216 = sbr.rel (%p214) target = $region40
        $region39: #{tpu_custom_call.1} parent=35 // pred_region
          %217 = dma.done %s210, 64
        $region40: #{tpu_custom_call.1} parent=35 // pred_fallthru
          _
        %s218 = sand.u32 %s58, 1
        %s219 = scalar_lea.sflag [#allocation6], %s218
        %s220 = sand.u32 %s58, 1
        %s221 = smul.addr %s220, 12
        %s222 = scalar_lea.vmem [#allocation5], %s221
        // Predicated region
        $region41: #{tpu_custom_call.1} parent=35 // pred_check
          %p223 = pneg %p71
        $region42: #{tpu_custom_call.1} parent=35 // pred_check_branch
          %225 = sbr.rel (%p223) target = $region44
        $region43: #{tpu_custom_call.1} parent=35 // pred_region
          %226 = dma.done %s219, 192
        $region44: #{tpu_custom_call.1} parent=35 // pred_fallthru
          _
        %s227 = sand.u32 %s32, 1
        %s228 = scalar_lea.sflag [#allocation3], %s227
        %s229 = sand.u32 %s32, 1
        %s230 = smul.addr %s229, 4
        %s231 = scalar_lea.vmem [#allocation2], %s230
        %p232 = pneg %p45
        %p233 = pneg %p42
        %s234 = sand.u32 %s58, 1
        %s235 = scalar_lea.sflag [#allocation6], %s234
        %s236 = sand.u32 %s58, 1
        %s237 = smul.addr %s236, 12
        %s238 = scalar_lea.vmem [#allocation5], %s237
        %p239 = pneg %p71
        %p240 = pneg %p68
        %p241 = pneg %p92
        %p242 = pneg %p89
        %p243 = pneg %p113
        %p244 = pneg %p110
        %p245 = pneg %p139
        %p246 = pneg %p136
        %s247 = sand.u32 %s126, 1
        %s248 = scalar_lea.sflag [#allocation4], %s247
        %s249 = sand.u32 %s126, 1
        %s250 = smul.addr %s249, 4
        %s251 = scalar_lea.vmem [#allocation7], %s250
        %v253 = vld [vmem:[%s2] sm:$0x3]
        %v254 = vld [vmem:[%s222] sm:$0xf]
        %v255 = vld [vmem:[%s222 + $0x4] sm:$0xf]
        %v256 = vld [vmem:[%s222 + $0x8] sm:$0xf]
        %v260 = vunpack.c.l.b16 %v254
        %v261 = vunpack.c.l.b16 %v255
        %v262 = vunpack.c.l.b16 %v256
        %v263 = vpack.c.b16 %v261, %v260
        %v264 = vpack.c.b16 %v262, %v262
        %vm266 = vcmask 195584
        %v268 = vsel %vm266, %v253, 0
        %vm270 = vcmask 1043456
        %v272 = vsel %vm270, %v264, 0
        %274 = vmatprep.subr.bf16.mxu0 0
        %275 = vmatpush1.bf16.msra.mxu0 0
        %276 = vmatprep.subr.bf16.mxu0 0
        %277 = vmatpush1.bf16.msra.mxu0 0
        %278 = vmatprep.subr.bf16.mxu0 0
        %279 = vmatpush1.bf16.msra.mxu0 0
        %280 = vmatprep.subr.bf16.mxu0 0
        %281 = vmatpush1.bf16.msra.mxu0 0
        %282 = vmatprep.subr.bf16.mxu0 0
        %283 = vmatpush1.bf16.msra.mxu0 0
        %284 = vmatprep.subr.bf16.mxu0 0
        %285 = vmatpush1.bf16.msra.mxu0 0
        %286 = vmatprep.subr.bf16.mxu0 0
        %287 = vmatpush1.bf16.msra.mxu0 %v272
        %288 = vmatprep.subr.bf16.mxu0 0
        %289 = vmatpush1.bf16.msra.mxu0 %v263
        %290 = vmatprep.subr.bf16.mxu0 0
        %291 = vmatpush2.bf16.msra.mxu0 0
        %292 = vmatprep.subr.bf16.mxu0 0
        %293 = vmatpush2.bf16.msra.mxu0 0
        %294 = vmatprep.subr.bf16.mxu0 0
        %295 = vmatpush2.bf16.msra.mxu0 0
        %296 = vmatprep.subr.bf16.mxu0 0
        %297 = vmatpush2.bf16.msra.mxu0 0
        %298 = vmatprep.subr.bf16.mxu0 0
        %299 = vmatpush2.bf16.msra.mxu0 0
        %300 = vmatprep.subr.bf16.mxu0 0
        %301 = vmatpush2.bf16.msra.mxu0 0
        %302 = vmatprep.subr.bf16.mxu0 0
        %303 = vmatpush2.bf16.msra.mxu0 0
        %304 = vmatprep.subr.bf16.mxu0 0
        %305 = vmatpush2.bf16.msra.mxu0 0
        %306 = vmatprep.mubr.bf16.mxu0 0
        %307 = vmatmul.mubr.bf16.gmra.mxu0 %v268
        %v308 = vpop.f32.mrf.mxu0
        %v309 = vadd.f32 0.0, %v308
        %v310 = vpop.f32.mrf.mxu0
        %v311 = vpop.f32.mrf.mxu0
        %v312 = vpop.f32.mrf.mxu0
        %313 = vdwg.mxu0
        %v314 = vld [vmem:[%s213] sm:$0x7]
        %v315 = vunpack.c.l.bf16 %v314
        %v316 = vmax.f32 %v315, 1.0
        %v317 = vrcp.pop %v316
        %v318 = vlaneseq
        %v319 = vshrl.u32 %v318, 7
        %v320 = vsub.s32 4, %v319
        %v321 = vrot.slane %v317, %v320
        %v322 = vmul.f32 %v309, %v321
        %v323 = vadd.f32 %v315, %v322
        %vm324 = vcmp.gt.f32.partialorder %v315, 0.0
        %v325 = vld [vmem:[%s3] sm:$0xf]
        %v326 = vsel %vm324, 1, 0
        %v327 = vlaneseq
        %v328 = vshrl.u32 %v327, 7
        %v329 = vsub.s32 5, %v328
        %v330 = vrot.slane %v326, %v329
        %vm331 = vcmp.eq.s32.totalorder %v330, 1
        %333 = vset.pattern.permute.xlu0 0
        %334 = vperm.xlu0 %333, %v325
        %v335 = vpop.permute.xlu0 %334
        %v337 = vsel %vm331, %v335, %v323
        %338 = vst [vmem:[%s251] sm:$0xf] %v337
        %s339 = sand.u32 %s126, 1
        %s340 = scalar_lea.sflag [#allocation4], %s339
        %s341 = sand.u32 %s126, 1
        %s342 = smul.addr %s341, 4
        %s343 = scalar_lea.vmem [#allocation7], %s342
        // Predicated region
        $region45: #{tpu_custom_call.1} parent=35 // pred_check
          %p344 = pneg %p136
        $region46: #{tpu_custom_call.1} parent=35 // pred_check_branch
          %346 = sbr.rel (%p344) target = $region48
        $region47: #{tpu_custom_call.1} parent=35 // pred_region
          %s348 = ssub.s32 64, 64
          %349 = vsyncadd %s340, %s348
          %s350 = smul.addr %s24, 64
          %s351 = scalar_lea.hbm %s4, %s350
          %s353 = sshll.u32 %s343, 4
          %s354 = int_to_ptr.vmem [resolvable:$true] %s353
          %356 = dma.vmem_to_hbm [thread:$0]  %s354, 64, %s351, %s340
        $region48: #{tpu_custom_call.1} parent=35 // pred_fallthru
          _
      $region36: #{tpu_custom_call.1} parent=5 // pred_fallthru
        _
      %p357 = scmp.le.s32.totalorder 2, %s19
      // Predicated region
      $region49: #{tpu_custom_call.1} parent=5 // pred_check
        %p358 = pneg %p357
      $region50: #{tpu_custom_call.1} parent=5 // pred_check_branch
        %360 = sbr.rel (%p358) target = $region52
      $region51: #{tpu_custom_call.1} parent=5 // pred_region
        %s361 = ssub.s32 %s19, 2
        // Predicated region
        $region53: #{tpu_custom_call.1} parent=51 // pred_check
          %p362 = pneg %p142
        $region54: #{tpu_custom_call.1} parent=51 // pred_check_branch
          %364 = sbr.rel (%p362) target = $region56
        $region55: #{tpu_custom_call.1} parent=51 // pred_region
          %s365 = sand.u32 %s127, 1
          %s366 = scalar_lea.sflag [#allocation4], %s365
          %s367 = sand.u32 %s127, 1
          %s368 = smul.addr %s367, 4
          %s369 = scalar_lea.vmem [#allocation7], %s368
          %370 = dma.done %s366, 64
        $region56: #{tpu_custom_call.1} parent=51 // pred_fallthru
          _
      $region52: #{tpu_custom_call.1} parent=5 // pred_fallthru
        _
    $region6: #{tpu_custom_call.1} parent=1 // loop_footer
      %s23 = sadd.s32 1, %s19
    $region7: #{tpu_custom_call.1} parent=1 // loop_footer_branch
      %18 = sbr.rel target = $region3
    $region8: #{tpu_custom_call.1} parent=1 // loop_exit
      _
    %371 = vsyncpa [#allocation3], 1
    %s372 = scalar_lea.sflag [#allocation3], 1
    %373 = vsyncpa %s372, 1
    %374 = vsyncpa [#allocation6], 1
    %s375 = scalar_lea.sflag [#allocation6], 1
    %376 = vsyncpa %s375, 1
    %377 = vsyncpa [#allocation4], 1
    %s378 = scalar_lea.sflag [#allocation4], 1
    %379 = vsyncpa %s378, 1

</llo_original>
